<compile_context>
chip_gen: v7x
topology: tpu7x:2x2x1
jax: 0.10.0
libtpu: 0.0.40
codegen_flags: <defaults>
</compile_context>

<pallas_src>
import functools

import jax
import jax.numpy as jnp
from jax.experimental import pallas as pl
from jax.experimental.pallas import tpu as pltpu


def _conv_mxu_kernel(x_ref, w_ref, o_ref):
    # x_ref: (1, KC_pad, TL)  im2col slab (contraction rows x lane tile)
    # w_ref: (C_out, KC_pad)  lane-dense weights (+ bias column), resident
    # o_ref: (1, C_out, TL)   lane-dense output tile
    acc = jnp.dot(w_ref[...], x_ref[0], preferred_element_type=jnp.float32)
    o_ref[0] = jnp.maximum(acc, 0.0).astype(o_ref.dtype)


def _conv_vpu_kernel(x_ref, w_ref, o_ref, *, n_rows):
    # Tiny contraction depth: skip the MXU, do unrolled broadcast MACs on the
    # VPU over the (C_out, TL) tile.  n_rows = K*C_in + 1 (bias row included).
    xc = x_ref[0]                      # (KC_pad, TL)
    w = w_ref[...]                     # (C_out, KC_pad)
    acc = w[:, 0:1] * xc[0:1, :]       # (C_out, 1) * (1, TL) -> (C_out, TL)
    for r in range(1, n_rows):         # static, small unroll
        acc = acc + w[:, r:r + 1] * xc[r:r + 1, :]
    o_ref[0] = jnp.maximum(acc, 0.0).astype(o_ref.dtype)


def conv1d_relu(x, weight, bias, *, lane_tile=512):
    """x: (B, C_in, L) f32; weight: (C_out, C_in, K); bias: (C_out,)."""
    B, C_in, L = x.shape
    C_out, _, K = weight.shape
    pad = K // 2
    L_out = L + 2 * pad - K + 1

    # ---- glue in plain JAX: im2col + lane-dense layouts --------------------
    x_pad = jnp.pad(x, ((0, 0), (0, 0), (pad, pad)))                 # (B, C_in, L+2p)
    # row r = j*C_in + c  holds  x_pad[:, c, l + j]
    cols = jnp.concatenate([x_pad[:, :, j:j + L_out] for j in range(K)],
                           axis=1)                                   # (B, K*C_in, L_out)

    KC = K * C_in + 1                         # +1 ones-row -> bias folded into matmul
    KC_pad = ((KC + 7) // 8) * 8              # sublane-align the contraction dim

    # Lane tile: multiple of 128, capped so double-buffered in+out tiles stay
    # well under v7x's scoped-VMEM default (no vmem_limit_bytes override needed).
    TL = min(lane_tile, ((L_out + 127) // 128) * 128)
    TL = max(128, min(TL, 1024))
    vmem_budget = 8 * 1024 * 1024
    while TL > 128 and 2 * 4 * TL * (KC_pad + C_out) > vmem_budget:
        TL //= 2
    TL = max(128, (TL // 128) * 128)
    n_l = pl.cdiv(L_out, TL)
    L_tiled = n_l * TL

    xc = jnp.zeros((B, KC_pad, L_tiled), x.dtype)
    xc = xc.at[:, :K * C_in, :L_out].set(cols)
    xc = xc.at[:, K * C_in, :].set(1.0)       # bias row (padded cols sliced off later)

    # weight (C_out, C_in, K) -> lane-dense (C_out, KC_pad), bias in col K*C_in
    w2 = jnp.transpose(weight, (2, 1, 0)).reshape(K * C_in, C_out).T  # (C_out, K*C_in)
    w2 = jnp.zeros((C_out, KC_pad), weight.dtype).at[:, :K * C_in].set(w2)
    w2 = w2.at[:, K * C_in].set(bias)

    # MXU only pays off with a reasonable contraction depth; tiny channel
    # counts go to the unrolled VPU path.
    if KC < 32:
        kernel = functools.partial(_conv_vpu_kernel, n_rows=KC)
    else:
        kernel = _conv_mxu_kernel

    out = pl.pallas_call(
        kernel,
        out_shape=jax.ShapeDtypeStruct((B, C_out, L_tiled), x.dtype),
        grid_spec=pltpu.PrefetchScalarGridSpec(
            num_scalar_prefetch=0,
            grid=(B, n_l),
            in_specs=[
                pl.BlockSpec((1, KC_pad, TL), lambda b, l: (b, 0, l)),
                pl.BlockSpec((C_out, KC_pad), lambda b, l: (0, 0)),   # resident weights
            ],
            out_specs=pl.BlockSpec((1, C_out, TL), lambda b, l: (b, 0, l)),
        ),
        compiler_params=pltpu.CompilerParams(
            # both axes independent -> shard across v7x's 2 TensorCores
            dimension_semantics=("parallel", "parallel")),
    )(xc, w2)

    return out[:, :, :L_out]


def _reference_conv1d_relu(x, weight, bias):
    # Pure-JAX reference matching nn.Conv1d(padding=K//2) + ReLU.
    B, C_in, L = x.shape
    C_out, _, K = weight.shape
    pad = K // 2
    x_pad = jnp.pad(x, ((0, 0), (0, 0), (pad, pad)))
    L_out = L + 2 * pad - K + 1
    out = jnp.zeros((B, C_out, L_out), jnp.float32)
    for j in range(K):
        out = out + jnp.einsum('oc,bcl->bol', weight[:, :, j],
                               x_pad[:, :, j:j + L_out])
    out = out + bias[None, :, None]
    return jnp.maximum(out, 0.0)


if __name__ == "__main__":
    # Small shapes consistent with the module's forward (Conv1d over NCL input).
    B, C_in, C_out, K, L = 2, 4, 8, 3, 16
    L_out = L + 2 * (K // 2) - K + 1          # == L for odd K

    key = jax.random.PRNGKey(0)
    kx, kw, kb = jax.random.split(key, 3)

    # Deterministic parameter init (PyTorch-style uniform bound 1/sqrt(C_in*K)).
    bound = 1.0 / jnp.sqrt(jnp.float32(C_in * K))
    weight = jax.random.uniform(kw, (C_out, C_in, K), jnp.float32, -bound, bound)
    bias = jax.random.uniform(kb, (C_out,), jnp.float32, -bound, bound)
    x = jax.random.normal(kx, (B, C_in, L), jnp.float32)

    y = conv1d_relu(x, weight, bias)
    y = jax.block_until_ready(y)

    y_ref = _reference_conv1d_relu(x, weight, bias)
    assert y.shape == (B, C_out, L_out), y.shape
    assert jnp.allclose(y, y_ref, atol=1e-5, rtol=1e-5), "mismatch vs reference"

    # TODO(synk): train_model (optimizer loop) is host-side training code, not
    # part of the forward pass, so it is intentionally not ported to Pallas.
    print("KERNEL_OK")
</pallas_src>

<mosaic_0001>
module attributes {stable_mosaic.version = 11 : i64} {
  func.func @_conv_vpu_kernel(%arg0: i32, %arg1: i32, %arg2: memref<1x16x128xf32, #tpu.memory_space<vmem>>, %arg3: memref<8x16xf32, #tpu.memory_space<vmem>>, %arg4: memref<1x8x128xf32, #tpu.memory_space<vmem>>) attributes {dimension_semantics = [#tpu.dimension_semantics<parallel>, #tpu.dimension_semantics<parallel>], iteration_bounds = array<i64: 2, 1>, scalar_prefetch = 0 : i64, scratch_operands = 0 : i64, tpu.core_type = #tpu.core_type<tc>, window_params = [{transform_indices = @transform_0, window_bounds = array<i64: 1, 16, 128>}, {pipeline_mode = #tpu.pipeline_mode<synchronous>, transform_indices = @transform_1, window_bounds = array<i64: 8, 16>}, {transform_indices = @transform_2, window_bounds = array<i64: 1, 8, 128>}]} {
    %c0 = arith.constant 0 : index
    %c0_0 = arith.constant 0 : index
    %c0_1 = arith.constant 0 : index
    %0 = vector.load %arg2[%c0, %c0_0, %c0_1] : memref<1x16x128xf32, #tpu.memory_space<vmem>>, vector<1x16x128xf32>
    %1 = vector.shape_cast %0 : vector<1x16x128xf32> to vector<16x128xf32>
    %c0_2 = arith.constant 0 : index
    %c0_3 = arith.constant 0 : index
    %2 = vector.load %arg3[%c0_2, %c0_3] : memref<8x16xf32, #tpu.memory_space<vmem>>, vector<8x16xf32>
    %3 = vector.extract_strided_slice %2 {offsets = [0, 0], sizes = [8, 1], strides = [1, 1]} : vector<8x16xf32> to vector<8x1xf32>
    %4 = vector.extract_strided_slice %1 {offsets = [0, 0], sizes = [1, 128], strides = [1, 1]} : vector<16x128xf32> to vector<1x128xf32>
    %5 = vector.broadcast %3 : vector<8x1xf32> to vector<8x128xf32>
    %6 = vector.broadcast %4 : vector<1x128xf32> to vector<8x128xf32>
    %7 = arith.mulf %5, %6 : vector<8x128xf32>
    %8 = vector.extract_strided_slice %2 {offsets = [0, 1], sizes = [8, 1], strides = [1, 1]} : vector<8x16xf32> to vector<8x1xf32>
    %9 = vector.extract_strided_slice %1 {offsets = [1, 0], sizes = [1, 128], strides = [1, 1]} : vector<16x128xf32> to vector<1x128xf32>
    %10 = vector.broadcast %8 : vector<8x1xf32> to vector<8x128xf32>
    %11 = vector.broadcast %9 : vector<1x128xf32> to vector<8x128xf32>
    %12 = arith.mulf %10, %11 : vector<8x128xf32>
    %13 = arith.addf %7, %12 : vector<8x128xf32>
    %14 = vector.extract_strided_slice %2 {offsets = [0, 2], sizes = [8, 1], strides = [1, 1]} : vector<8x16xf32> to vector<8x1xf32>
    %15 = vector.extract_strided_slice %1 {offsets = [2, 0], sizes = [1, 128], strides = [1, 1]} : vector<16x128xf32> to vector<1x128xf32>
    %16 = vector.broadcast %14 : vector<8x1xf32> to vector<8x128xf32>
    %17 = vector.broadcast %15 : vector<1x128xf32> to vector<8x128xf32>
    %18 = arith.mulf %16, %17 : vector<8x128xf32>
    %19 = arith.addf %13, %18 : vector<8x128xf32>
    %20 = vector.extract_strided_slice %2 {offsets = [0, 3], sizes = [8, 1], strides = [1, 1]} : vector<8x16xf32> to vector<8x1xf32>
    %21 = vector.extract_strided_slice %1 {offsets = [3, 0], sizes = [1, 128], strides = [1, 1]} : vector<16x128xf32> to vector<1x128xf32>
    %22 = vector.broadcast %20 : vector<8x1xf32> to vector<8x128xf32>
    %23 = vector.broadcast %21 : vector<1x128xf32> to vector<8x128xf32>
    %24 = arith.mulf %22, %23 : vector<8x128xf32>
    %25 = arith.addf %19, %24 : vector<8x128xf32>
    %26 = vector.extract_strided_slice %2 {offsets = [0, 4], sizes = [8, 1], strides = [1, 1]} : vector<8x16xf32> to vector<8x1xf32>
    %27 = vector.extract_strided_slice %1 {offsets = [4, 0], sizes = [1, 128], strides = [1, 1]} : vector<16x128xf32> to vector<1x128xf32>
    %28 = vector.broadcast %26 : vector<8x1xf32> to vector<8x128xf32>
    %29 = vector.broadcast %27 : vector<1x128xf32> to vector<8x128xf32>
    %30 = arith.mulf %28, %29 : vector<8x128xf32>
    %31 = arith.addf %25, %30 : vector<8x128xf32>
    %32 = vector.extract_strided_slice %2 {offsets = [0, 5], sizes = [8, 1], strides = [1, 1]} : vector<8x16xf32> to vector<8x1xf32>
    %33 = vector.extract_strided_slice %1 {offsets = [5, 0], sizes = [1, 128], strides = [1, 1]} : vector<16x128xf32> to vector<1x128xf32>
    %34 = vector.broadcast %32 : vector<8x1xf32> to vector<8x128xf32>
    %35 = vector.broadcast %33 : vector<1x128xf32> to vector<8x128xf32>
    %36 = arith.mulf %34, %35 : vector<8x128xf32>
    %37 = arith.addf %31, %36 : vector<8x128xf32>
    %38 = vector.extract_strided_slice %2 {offsets = [0, 6], sizes = [8, 1], strides = [1, 1]} : vector<8x16xf32> to vector<8x1xf32>
    %39 = vector.extract_strided_slice %1 {offsets = [6, 0], sizes = [1, 128], strides = [1, 1]} : vector<16x128xf32> to vector<1x128xf32>
    %40 = vector.broadcast %38 : vector<8x1xf32> to vector<8x128xf32>
    %41 = vector.broadcast %39 : vector<1x128xf32> to vector<8x128xf32>
    %42 = arith.mulf %40, %41 : vector<8x128xf32>
    %43 = arith.addf %37, %42 : vector<8x128xf32>
    %44 = vector.extract_strided_slice %2 {offsets = [0, 7], sizes = [8, 1], strides = [1, 1]} : vector<8x16xf32> to vector<8x1xf32>
    %45 = vector.extract_strided_slice %1 {offsets = [7, 0], sizes = [1, 128], strides = [1, 1]} : vector<16x128xf32> to vector<1x128xf32>
    %46 = vector.broadcast %44 : vector<8x1xf32> to vector<8x128xf32>
    %47 = vector.broadcast %45 : vector<1x128xf32> to vector<8x128xf32>
    %48 = arith.mulf %46, %47 : vector<8x128xf32>
    %49 = arith.addf %43, %48 : vector<8x128xf32>
    %50 = vector.extract_strided_slice %2 {offsets = [0, 8], sizes = [8, 1], strides = [1, 1]} : vector<8x16xf32> to vector<8x1xf32>
    %51 = vector.extract_strided_slice %1 {offsets = [8, 0], sizes = [1, 128], strides = [1, 1]} : vector<16x128xf32> to vector<1x128xf32>
    %52 = vector.broadcast %50 : vector<8x1xf32> to vector<8x128xf32>
    %53 = vector.broadcast %51 : vector<1x128xf32> to vector<8x128xf32>
    %54 = arith.mulf %52, %53 : vector<8x128xf32>
    %55 = arith.addf %49, %54 : vector<8x128xf32>
    %56 = vector.extract_strided_slice %2 {offsets = [0, 9], sizes = [8, 1], strides = [1, 1]} : vector<8x16xf32> to vector<8x1xf32>
    %57 = vector.extract_strided_slice %1 {offsets = [9, 0], sizes = [1, 128], strides = [1, 1]} : vector<16x128xf32> to vector<1x128xf32>
    %58 = vector.broadcast %56 : vector<8x1xf32> to vector<8x128xf32>
    %59 = vector.broadcast %57 : vector<1x128xf32> to vector<8x128xf32>
    %60 = arith.mulf %58, %59 : vector<8x128xf32>
    %61 = arith.addf %55, %60 : vector<8x128xf32>
    %62 = vector.extract_strided_slice %2 {offsets = [0, 10], sizes = [8, 1], strides = [1, 1]} : vector<8x16xf32> to vector<8x1xf32>
    %63 = vector.extract_strided_slice %1 {offsets = [10, 0], sizes = [1, 128], strides = [1, 1]} : vector<16x128xf32> to vector<1x128xf32>
    %64 = vector.broadcast %62 : vector<8x1xf32> to vector<8x128xf32>
    %65 = vector.broadcast %63 : vector<1x128xf32> to vector<8x128xf32>
    %66 = arith.mulf %64, %65 : vector<8x128xf32>
    %67 = arith.addf %61, %66 : vector<8x128xf32>
    %68 = vector.extract_strided_slice %2 {offsets = [0, 11], sizes = [8, 1], strides = [1, 1]} : vector<8x16xf32> to vector<8x1xf32>
    %69 = vector.extract_strided_slice %1 {offsets = [11, 0], sizes = [1, 128], strides = [1, 1]} : vector<16x128xf32> to vector<1x128xf32>
    %70 = vector.broadcast %68 : vector<8x1xf32> to vector<8x128xf32>
    %71 = vector.broadcast %69 : vector<1x128xf32> to vector<8x128xf32>
    %72 = arith.mulf %70, %71 : vector<8x128xf32>
    %73 = arith.addf %67, %72 : vector<8x128xf32>
    %74 = vector.extract_strided_slice %2 {offsets = [0, 12], sizes = [8, 1], strides = [1, 1]} : vector<8x16xf32> to vector<8x1xf32>
    %75 = vector.extract_strided_slice %1 {offsets = [12, 0], sizes = [1, 128], strides = [1, 1]} : vector<16x128xf32> to vector<1x128xf32>
    %76 = vector.broadcast %74 : vector<8x1xf32> to vector<8x128xf32>
    %77 = vector.broadcast %75 : vector<1x128xf32> to vector<8x128xf32>
    %78 = arith.mulf %76, %77 : vector<8x128xf32>
    %79 = arith.addf %73, %78 : vector<8x128xf32>
    %cst = arith.constant 0.000000e+00 : f32
    %80 = vector.broadcast %cst : f32 to vector<8x128xf32>
    %81 = arith.maximumf %79, %80 : vector<8x128xf32>
    %c0_4 = arith.constant 0 : index
    %c0_5 = arith.constant 0 : index
    %c0_6 = arith.constant 0 : index
    %82 = vector.load %arg4[%c0_4, %c0_5, %c0_6] : memref<1x8x128xf32, #tpu.memory_space<vmem>>, vector<1x8x128xf32>
    %83 = vector.shape_cast %82 : vector<1x8x128xf32> to vector<8x128xf32>
    %84 = vector.shape_cast %81 : vector<8x128xf32> to vector<1x8x128xf32>
    tpu.vector_store %arg4[%c0_4, %c0_5, %c0_6], %84 {strides = array<i32>} : memref<1x8x128xf32, #tpu.memory_space<vmem>>, vector<1x8x128xf32>,
    return
  }
  func.func @transform_0(%arg0: i32, %arg1: i32) -> (i32, i32, i32) {
    %c0_i32 = arith.constant 0 : i32
    %c0_i32_0 = arith.constant 0 : i32
    return %arg0, %c0_i32, %arg1 : i32, i32, i32
  }
  func.func @transform_1(%arg0: i32, %arg1: i32) -> (i32, i32) {
    %c0_i32 = arith.constant 0 : i32
    %c0_i32_0 = arith.constant 0 : i32
    %c0_i32_1 = arith.constant 0 : i32
    return %c0_i32, %c0_i32_0 : i32, i32
  }
  func.func @transform_2(%arg0: i32, %arg1: i32) -> (i32, i32, i32) {
    %c0_i32 = arith.constant 0 : i32
    %c0_i32_0 = arith.constant 0 : i32
    return %arg0, %c0_i32, %arg1 : i32, i32, i32
  }
}

</mosaic_0001>

<llo_original>
// kernel: tpu_custom_call.1
$region0: #{tpu_custom_call.1}
  #allocation0 [shape = 'u32[]', space=smem, size = 0x4, offset = 0x4, fixed_abs, tag = 'smem constant byte address 0x4 - core index']
  #allocation1 [shape = 'u32[144,128]{1,0:T(1,128)}', space=vmem, size = 0x12000, scoped, tag = 'internal scratch']
  %s0 = inlined_call_operand.hbm [shape: f32[2,16,128], index: 0, kind: input, shape index: {}]
  %s1 = inlined_call_operand.hbm [shape: f32[8,16], index: 1, kind: input, shape index: {}]
  %s2 = inlined_call_operand.hbm [shape: f32[2,8,128], index: 2, kind: output, shape index: {}]
  %s3 = sld [smem:[#allocation0]]
  $region49: #{tpu_custom_call.1} parent=0
    _
  %s5 = ssub.s32 1, %s3
  %s6 = scalar_select 0, %s5, %s3
  $region1: #{tpu_custom_call.1} parent=0
    #allocation2 [shape = 'u8[16384]{0}', space=vmem, size = 0x4000, scoped, tag = 'input window, operand 0']
    #allocation3 [shape = 's32[2]{0}', space=sflag, size = 0x8, scoped, tag = 'scoped memory for tpu_custom_call.1']
    #allocation4 [shape = 's32[2]{0}', space=sflag, size = 0x8, scoped, tag = 'scoped memory for tpu_custom_call.1']
    #allocation5 [shape = 'u8[4096]{0}', space=vmem, size = 0x1000, scoped, tag = 'input window, operand 1, single buffered']
    #allocation6 [shape = 's32[1]{0}', space=sflag, size = 0x4, scoped, tag = 'scoped memory for tpu_custom_call.1']
    #allocation7 [shape = 'u8[8192]{0}', space=vmem, size = 0x2000, scoped, tag = 'output window, operand 0']
    %7 = vsyncpa [#allocation3], 0
    %s8 = scalar_lea.sflag [#allocation3], 1
    %9 = vsyncpa %s8, 0
    %10 = vsyncpa [#allocation6], 0
    %11 = vsyncpa [#allocation4], 0
    %s12 = scalar_lea.sflag [#allocation4], 1
    %13 = vsyncpa %s12, 0
    loop: start=0, step=1, limit=4
    $region2: #{tpu_custom_call.1} parent=1 // loop_pre_header
      _
    $region3: #{tpu_custom_call.1} parent=1 // loop_header
      %s15 = sphi 0, %s19
      %p16 = scmp.ge.s32.totalorder %s15, 4
      %s22 = sphi 0, %s34
      %s23 = sphi 0, %s30
      %s24 = sphi 0, %s22
      %s25 = sphi 0, %s23
      %s26 = sphi 0, %s24
      %s27 = sphi 0, %s25
      %s39 = sphi 0, %s41
      %s42 = sphi 0, %s39
      %s43 = sphi 0, %s42
      %s59 = sphi 0, %s43
      %s63 = sphi 0, %s63
      %s65 = sphi 0, %s63
      %s66 = sphi 0, %s65
      %s80 = sphi 0, %s66
      %s88 = sphi 0, %s90
      %s91 = sphi 0, %s88
      %s92 = sphi 0, %s91
      %s108 = sphi 0, %s92
    $region4: #{tpu_custom_call.1} parent=1 // loop_header_branch
      %18 = sbr.rel (%p16) target = $region8
    $region5: #{tpu_custom_call.1} parent=1 // loop_body
      %s20 = ssub.s32 %s15, 1
      %s21 = ssub.s32 %s15, 2
      %s28 = sadd.s32 1, %s23
      %p29 = scmp.ge.s32.totalorder %s28, 1
      %s30 = scalar_select %p29, 0, %s28
      %s31 = sadd.s32 1, %s22
      %s32 = scalar_select %p29, %s31, %s22
      %p33 = scmp.ge.s32.totalorder %s32, 2
      %s34 = scalar_select %p33, 0, %s32
      %s35 = ssub.s32 %s22, %s34
      %s36 = ssub.s32 %s23, %s30
      %s37 = sor.u32 %s35, %s36
      %p38 = scmp.eq.s32.totalorder %s37, 0
      %s40 = sadd.s32 %s39, 1
      %s41 = scalar_select %p38, %s39, %s40
      %p44 = pneg %p38
      %p45 = scmp.eq.s32.totalorder %s15, 1
      %p46 = por %p44, %p45
      %p47 = scmp.ne.s32.totalorder %s39, %s42
      %p48 = scmp.eq.s32.totalorder %s15, 0
      %p49 = por %p47, %p48
      %p50 = scmp.ne.s32.totalorder %s39, %s42
      %p51 = scmp.eq.s32.totalorder %s20, 1
      %p52 = por %p50, %p51
      %p53 = scmp.ne.s32.totalorder %s42, %s43
      %p54 = scmp.eq.s32.totalorder %s20, 0
      %p55 = por %p53, %p54
      %p56 = scmp.ne.s32.totalorder %s42, %s43
      %p57 = scmp.eq.s32.totalorder %s21, 1
      %p58 = por %p56, %p57
      %p60 = scmp.ne.s32.totalorder %s43, %s59
      %p61 = scmp.eq.s32.totalorder %s21, 0
      %p62 = por %p60, %p61
      %s64 = sadd.s32 %s63, 1
      %p67 = scmp.eq.s32.totalorder %s15, 1
      %p68 = scmp.ne.s32.totalorder %s63, %s65
      %p69 = scmp.eq.s32.totalorder %s15, 0
      %p70 = por %p68, %p69
      %p71 = scmp.ne.s32.totalorder %s63, %s65
      %p72 = scmp.eq.s32.totalorder %s20, 1
      %p73 = por %p71, %p72
      %p74 = scmp.ne.s32.totalorder %s65, %s66
      %p75 = scmp.eq.s32.totalorder %s20, 0
      %p76 = por %p74, %p75
      %p77 = scmp.ne.s32.totalorder %s65, %s66
      %p78 = scmp.eq.s32.totalorder %s21, 1
      %p79 = por %p77, %p78
      %p81 = scmp.ne.s32.totalorder %s66, %s80
      %p82 = scmp.eq.s32.totalorder %s21, 0
      %p83 = por %p81, %p82
      %s84 = ssub.s32 %s22, %s34
      %s85 = ssub.s32 %s23, %s30
      %s86 = sor.u32 %s84, %s85
      %p87 = scmp.eq.s32.totalorder %s86, 0
      %s89 = sadd.s32 %s88, 1
      %s90 = scalar_select %p87, %s88, %s89
      %p93 = pneg %p87
      %p94 = scmp.eq.s32.totalorder %s15, 1
      %p95 = por %p93, %p94
      %p96 = scmp.ne.s32.totalorder %s88, %s91
      %p97 = scmp.eq.s32.totalorder %s15, 0
      %p98 = por %p96, %p97
      %p99 = scmp.ne.s32.totalorder %s88, %s91
      %p100 = scmp.eq.s32.totalorder %s20, 1
      %p101 = por %p99, %p100
      %p102 = scmp.ne.s32.totalorder %s91, %s92
      %p103 = scmp.eq.s32.totalorder %s20, 0
      %p104 = por %p102, %p103
      %p105 = scmp.ne.s32.totalorder %s91, %s92
      %p106 = scmp.eq.s32.totalorder %s21, 1
      %p107 = por %p105, %p106
      %p109 = scmp.ne.s32.totalorder %s92, %s108
      %p110 = scmp.eq.s32.totalorder %s21, 0
      %p111 = por %p109, %p110
      %p112 = scmp.le.s32.totalorder 1, %s15
      %p113 = scmp.lt.s32.totalorder %s15, 3
      %p114 = pnand %p112, %p113
      %p115 = pneg %p114
      // Predicated region
      $region9: #{tpu_custom_call.1} parent=5 // pred_check
        _
      $region10: #{tpu_custom_call.1} parent=5 // pred_check_branch
        %117 = sbr.rel (%p114) target = $region12
      $region11: #{tpu_custom_call.1} parent=5 // pred_region
        %s118 = ssub.s32 %s15, 1
        // Predicated region
        $region13: #{tpu_custom_call.1} parent=11 // pred_check
          %p119 = pneg %p76
        $region14: #{tpu_custom_call.1} parent=11 // pred_check_branch
          %121 = sbr.rel (%p119) target = $region16
        $region15: #{tpu_custom_call.1} parent=11 // pred_region
          %s123 = ssub.s32 128, 128
          %124 = vsyncadd [#allocation6], %s123
          %s126 = sshll.u32 [#allocation5], 4
          %s127 = int_to_ptr.vmem [resolvable:$true] %s126
          %129 = dma.hbm_to_vmem [thread:$0]  %s1, 128, %s127, [#allocation6]
        $region16: #{tpu_custom_call.1} parent=11 // pred_fallthru
          _
      $region12: #{tpu_custom_call.1} parent=5 // pred_fallthru
        _
      %p130 = scmp.lt.s32.totalorder %s15, 2
      // Predicated region
      $region17: #{tpu_custom_call.1} parent=5 // pred_check
        %p131 = pneg %p130
      $region18: #{tpu_custom_call.1} parent=5 // pred_check_branch
        %133 = sbr.rel (%p131) target = $region20
      $region19: #{tpu_custom_call.1} parent=5 // pred_region
        // Predicated region
        $region21: #{tpu_custom_call.1} parent=19 // pred_check
          %p134 = pneg %p49
        $region22: #{tpu_custom_call.1} parent=19 // pred_check_branch
          %136 = sbr.rel (%p134) target = $region24
        $region23: #{tpu_custom_call.1} parent=19 // pred_region
          %s137 = sand.u32 %s39, 1
          %s138 = scalar_lea.sflag [#allocation3], %s137
          %s139 = sand.u32 %s39, 1
          %s140 = smul.addr %s139, 16
          %s141 = scalar_lea.vmem [#allocation2], %s140
          %s143 = ssub.s32 256, 256
          %144 = vsyncadd %s138, %s143
          %s145 = smul.addr %s22, 2
          %s146 = sadd.s32 %s23, %s145
          %s147 = smul.addr %s146, 128
          %s148 = scalar_lea.hbm %s0, %s147
          %s149 = sshll.u32 %s141, 4
          %s150 = int_to_ptr.vmem [resolvable:$true] %s149
          %155 = dma.hbm_to_vmem [thread:$0]  %s148, 256, %s150, %s138, 128, 128, 8
        $region24: #{tpu_custom_call.1} parent=19 // pred_fallthru
          _
      $region20: #{tpu_custom_call.1} parent=5 // pred_fallthru
        _
      %p156 = scmp.le.s32.totalorder 1, %s15
      %p157 = scmp.lt.s32.totalorder %s15, 3
      %p158 = pnand %p156, %p157
      %p159 = pneg %p158
      // Predicated region
      $region25: #{tpu_custom_call.1} parent=5 // pred_check
        _
      $region26: #{tpu_custom_call.1} parent=5 // pred_check_branch
        %161 = sbr.rel (%p158) target = $region28
      $region27: #{tpu_custom_call.1} parent=5 // pred_region
        %s162 = ssub.s32 %s15, 1
        %s163 = sand.u32 %s42, 1
        %s164 = scalar_lea.sflag [#allocation3], %s163
        %s165 = sand.u32 %s42, 1
        %s166 = smul.addr %s165, 16
        %s167 = scalar_lea.vmem [#allocation2], %s166
        // Predicated region
        $region29: #{tpu_custom_call.1} parent=27 // pred_check
          %p168 = pneg %p55
        $region30: #{tpu_custom_call.1} parent=27 // pred_check_branch
          %170 = sbr.rel (%p168) target = $region32
        $region31: #{tpu_custom_call.1} parent=27 // pred_region
          %171 = dma.done %s164, 256
        $region32: #{tpu_custom_call.1} parent=27 // pred_fallthru
          _
        // Predicated region
        $region33: #{tpu_custom_call.1} parent=27 // pred_check
          %p172 = pneg %p76
        $region34: #{tpu_custom_call.1} parent=27 // pred_check_branch
          %174 = sbr.rel (%p172) target = $region36
        $region35: #{tpu_custom_call.1} parent=27 // pred_region
          %175 = dma.done [#allocation6], 128
        $region36: #{tpu_custom_call.1} parent=27 // pred_fallthru
          _
        %s176 = sand.u32 %s42, 1
        %s177 = scalar_lea.sflag [#allocation3], %s176
        %s178 = sand.u32 %s42, 1
        %s179 = smul.addr %s178, 16
        %s180 = scalar_lea.vmem [#allocation2], %s179
        %p181 = pneg %p55
        %p182 = pneg %p52
        %p183 = pneg %p76
        %p184 = pneg %p73
        %p185 = pneg %p104
        %p186 = pneg %p101
        %s187 = sand.u32 %s91, 1
        %s188 = scalar_lea.sflag [#allocation4], %s187
        %s189 = sand.u32 %s91, 1
        %s190 = smul.addr %s189, 8
        %s191 = scalar_lea.vmem [#allocation7], %s190
        %v192 = vld [vmem:[%s167] sm:$0xff]
        %v193 = vld [vmem:[%s167 + $0x8] sm:$0xff]
        %v194 = vld [vmem:[#allocation5] sm:$0xff]
        %196 = vset.pattern.permute.xlu0 0
        %197 = vperm.xlu0 %196, %v194
        %v198 = vpop.permute.xlu0 %197
        %v200 = vlaneseq
        %v201 = vshrl.u32 %v200, 7
        %v202 = vsub.s32 0, %v201
        %v203 = vrot.slane %v192, %v202
        %v204 = vmul.f32 %v198, %v203
        %205 = vset.pattern.permute.xlu0 1
        %206 = vperm.xlu0 %205, %v194
        %v207 = vpop.permute.xlu0 %206
        %v209 = vlaneseq
        %v210 = vshrl.u32 %v209, 7
        %v211 = vsub.s32 1, %v210
        %v212 = vrot.slane %v192, %v211
        %v213 = vmul.f32 %v207, %v212
        %v214 = vadd.f32 %v204, %v213
        %215 = vset.pattern.permute.xlu0 2
        %216 = vperm.xlu0 %215, %v194
        %v217 = vpop.permute.xlu0 %216
        %v219 = vlaneseq
        %v220 = vshrl.u32 %v219, 7
        %v221 = vsub.s32 2, %v220
        %v222 = vrot.slane %v192, %v221
        %v223 = vmul.f32 %v217, %v222
        %v224 = vadd.f32 %v214, %v223
        %225 = vset.pattern.permute.xlu0 3
        %226 = vperm.xlu0 %225, %v194
        %v227 = vpop.permute.xlu0 %226
        %v229 = vlaneseq
        %v230 = vshrl.u32 %v229, 7
        %v231 = vsub.s32 3, %v230
        %v232 = vrot.slane %v192, %v231
        %v233 = vmul.f32 %v227, %v232
        %v234 = vadd.f32 %v224, %v233
        %235 = vset.pattern.permute.xlu0 4
        %236 = vperm.xlu0 %235, %v194
        %v237 = vpop.permute.xlu0 %236
        %v239 = vlaneseq
        %v240 = vshrl.u32 %v239, 7
        %v241 = vsub.s32 4, %v240
        %v242 = vrot.slane %v192, %v241
        %v243 = vmul.f32 %v237, %v242
        %v244 = vadd.f32 %v234, %v243
        %245 = vset.pattern.permute.xlu0 5
        %246 = vperm.xlu0 %245, %v194
        %v247 = vpop.permute.xlu0 %246
        %v249 = vlaneseq
        %v250 = vshrl.u32 %v249, 7
        %v251 = vsub.s32 5, %v250
        %v252 = vrot.slane %v192, %v251
        %v253 = vmul.f32 %v247, %v252
        %v254 = vadd.f32 %v244, %v253
        %255 = vset.pattern.permute.xlu0 6
        %256 = vperm.xlu0 %255, %v194
        %v257 = vpop.permute.xlu0 %256
        %v259 = vlaneseq
        %v260 = vshrl.u32 %v259, 7
        %v261 = vsub.s32 6, %v260
        %v262 = vrot.slane %v192, %v261
        %v263 = vmul.f32 %v257, %v262
        %v264 = vadd.f32 %v254, %v263
        %265 = vset.pattern.permute.xlu0 7
        %266 = vperm.xlu0 %265, %v194
        %v267 = vpop.permute.xlu0 %266
        %v269 = vlaneseq
        %v270 = vshrl.u32 %v269, 7
        %v271 = vsub.s32 7, %v270
        %v272 = vrot.slane %v192, %v271
        %v273 = vmul.f32 %v267, %v272
        %v274 = vadd.f32 %v264, %v273
        %275 = vset.pattern.permute.xlu0 8
        %276 = vperm.xlu0 %275, %v194
        %v277 = vpop.permute.xlu0 %276
        %v279 = vlaneseq
        %v280 = vshrl.u32 %v279, 7
        %v281 = vsub.s32 0, %v280
        %v282 = vrot.slane %v193, %v281
        %v283 = vmul.f32 %v277, %v282
        %v284 = vadd.f32 %v274, %v283
        %285 = vset.pattern.permute.xlu0 9
        %286 = vperm.xlu0 %285, %v194
        %v287 = vpop.permute.xlu0 %286
        %v289 = vlaneseq
        %v290 = vshrl.u32 %v289, 7
        %v291 = vsub.s32 1, %v290
        %v292 = vrot.slane %v193, %v291
        %v293 = vmul.f32 %v287, %v292
        %v294 = vadd.f32 %v284, %v293
        %295 = vset.pattern.permute.xlu0 10
        %296 = vperm.xlu0 %295, %v194
        %v297 = vpop.permute.xlu0 %296
        %v299 = vlaneseq
        %v300 = vshrl.u32 %v299, 7
        %v301 = vsub.s32 2, %v300
        %v302 = vrot.slane %v193, %v301
        %v303 = vmul.f32 %v297, %v302
        %v304 = vadd.f32 %v294, %v303
        %305 = vset.pattern.permute.xlu0 11
        %306 = vperm.xlu0 %305, %v194
        %v307 = vpop.permute.xlu0 %306
        %v309 = vlaneseq
        %v310 = vshrl.u32 %v309, 7
        %v311 = vsub.s32 3, %v310
        %v312 = vrot.slane %v193, %v311
        %v313 = vmul.f32 %v307, %v312
        %v314 = vadd.f32 %v304, %v313
        %315 = vset.pattern.permute.xlu0 12
        %316 = vperm.xlu0 %315, %v194
        %v317 = vpop.permute.xlu0 %316
        %v319 = vlaneseq
        %v320 = vshrl.u32 %v319, 7
        %v321 = vsub.s32 4, %v320
        %v322 = vrot.slane %v193, %v321
        %v323 = vmul.f32 %v317, %v322
        %v324 = vadd.f32 %v314, %v323
        %v325 = vmax.f32 %v324, 0.0
        %326 = vst [vmem:[%s191] sm:$0xff] %v325
        %s327 = sand.u32 %s91, 1
        %s328 = scalar_lea.sflag [#allocation4], %s327
        %s329 = sand.u32 %s91, 1
        %s330 = smul.addr %s329, 8
        %s331 = scalar_lea.vmem [#allocation7], %s330
        // Predicated region
        $region37: #{tpu_custom_call.1} parent=27 // pred_check
          %p332 = pneg %p101
        $region38: #{tpu_custom_call.1} parent=27 // pred_check_branch
          %334 = sbr.rel (%p332) target = $region40
        $region39: #{tpu_custom_call.1} parent=27 // pred_region
          %s336 = ssub.s32 128, 128
          %337 = vsyncadd %s328, %s336
          %s338 = sadd.s32 %s25, %s24
          %s339 = smul.addr %s338, 128
          %s340 = scalar_lea.hbm %s2, %s339
          %s342 = sshll.u32 %s331, 4
          %s343 = int_to_ptr.vmem [resolvable:$true] %s342
          %345 = dma.vmem_to_hbm [thread:$0]  %s343, 128, %s340, %s328
        $region40: #{tpu_custom_call.1} parent=27 // pred_fallthru
          _
      $region28: #{tpu_custom_call.1} parent=5 // pred_fallthru
        _
      %p346 = scmp.le.s32.totalorder 2, %s15
      // Predicated region
      $region41: #{tpu_custom_call.1} parent=5 // pred_check
        %p347 = pneg %p346
      $region42: #{tpu_custom_call.1} parent=5 // pred_check_branch
        %349 = sbr.rel (%p347) target = $region44
      $region43: #{tpu_custom_call.1} parent=5 // pred_region
        %s350 = ssub.s32 %s15, 2
        // Predicated region
        $region45: #{tpu_custom_call.1} parent=43 // pred_check
          %p351 = pneg %p107
        $region46: #{tpu_custom_call.1} parent=43 // pred_check_branch
          %353 = sbr.rel (%p351) target = $region48
        $region47: #{tpu_custom_call.1} parent=43 // pred_region
          %s354 = sand.u32 %s92, 1
          %s355 = scalar_lea.sflag [#allocation4], %s354
          %s356 = sand.u32 %s92, 1
          %s357 = smul.addr %s356, 8
          %s358 = scalar_lea.vmem [#allocation7], %s357
          %359 = dma.done %s355, 128
        $region48: #{tpu_custom_call.1} parent=43 // pred_fallthru
          _
      $region44: #{tpu_custom_call.1} parent=5 // pred_fallthru
        _
    $region6: #{tpu_custom_call.1} parent=1 // loop_footer
      %s19 = sadd.s32 1, %s15
    $region7: #{tpu_custom_call.1} parent=1 // loop_footer_branch
      %14 = sbr.rel target = $region3
    $region8: #{tpu_custom_call.1} parent=1 // loop_exit
      _
    %360 = vsyncpa [#allocation3], 1
    %s361 = scalar_lea.sflag [#allocation3], 1
    %362 = vsyncpa %s361, 1
    %363 = vsyncpa [#allocation6], 1
    %364 = vsyncpa [#allocation4], 1
    %s365 = scalar_lea.sflag [#allocation4], 1
    %366 = vsyncpa %s365, 1

</llo_original>
